<compile_context>
chip_gen: v5e
topology: v5e:2x2
jax: 0.10.0
libtpu: 0.0.40
codegen_flags: <defaults>
</compile_context>

<pallas_src>
import functools

import numpy as np
import jax
import jax.numpy as jnp
from jax.experimental import pallas as pl
from jax.experimental.pallas import tpu as pltpu


_NUM_CORES = 2          # v7x has 2 TensorCores; masked / harmless on v5e & v6e.
_MAX_TILE_M = 16384     # keeps 2x lane-padded input block <= 16 MiB (v7x VMEM).


def _round_up(x, m):
    return ((x + m - 1) // m) * m


# ----------------------------------------------------------------------------
# Pallas kernel
# ----------------------------------------------------------------------------
def _pose_reg_kernel(r_ref, out_ref, acc_ref, *, tile_m, chunk, tiles_per_core,
                     n_valid):
    """Accumulates sum over valid rows of (R01 + R10) for this core's tiles."""
    c = pl.program_id(0)          # TensorCore split ("parallel")
    i = pl.program_id(1)          # row tiles of this core ("arbitrary"/reduce)

    @pl.when(i == 0)
    def _init():
        acc_ref[...] = jnp.zeros_like(acc_ref)

    # First *logical* (unclamped) global row of this block.  Rows >= n_valid
    # (ragged tail, or the clamped duplicate tiles of the second core) are
    # masked to zero below.
    row0 = (c * tiles_per_core + i) * tile_m

    # Lane mask selecting the R01 / R10 components of each flattened 3x3
    # (row-major flatten: index 1 = R01, index 3 = R10).
    lane = jax.lax.broadcasted_iota(jnp.int32, (chunk, 9), 1)
    col_keep = (lane == 1) | (lane == 3)

    def accumulate(off, r_chunk):
        row = row0 + off + jax.lax.broadcasted_iota(jnp.int32, (chunk, 9), 0)
        keep = col_keep & (row < n_valid)
        acc_ref[...] += jnp.where(keep, r_chunk, 0.0)

    num_chunks = tile_m // chunk
    if num_chunks == 1:
        # Single chunk == whole block (small-n path); static full load.
        accumulate(0, r_ref[...].astype(jnp.float32))
    else:
        def body(k, carry):
            off = pl.multiple_of(k * chunk, chunk)
            accumulate(off, r_ref[pl.ds(off, chunk), :].astype(jnp.float32))
            return carry
        jax.lax.fori_loop(0, num_chunks, body, 0)

    @pl.when(i == pl.num_programs(1) - 1)
    def _finalize():
        total = jnp.sum(acc_ref[...], keepdims=True)            # (1, 1)
        out_ref[...] = jnp.broadcast_to(total, out_ref.shape)   # lane-dense write


# ----------------------------------------------------------------------------
# Wrapper
# ----------------------------------------------------------------------------
def pose_regularization_loss(R, t=None, *, tile_m=8192, chunk=512):
    """Equivalent of PoseRegularizationLoss.forward(R, t).

    R: (B, nH, 3, 3) rotation matrices.  t is accepted for API parity but is
    unused by the forward pass (matching the PyTorch module).
    """
    del t  # unused by the PyTorch forward
    B, nH = R.shape[0], R.shape[1]
    n = B * nH

    # Natural layout: one flattened 3x3 per row.  Pure reshape of contiguous
    # data (no transpose, no pad, no dtype cast) -> no extra HBM pass.
    r2d = R.reshape(n, 9)

    # Sanitize tiling parameters (rows per chunk / per block).
    chunk = max(32, (int(chunk) // 32) * 32)
    tile_m = max(chunk, (int(tile_m) // chunk) * chunk)
    tile_m = min(tile_m, _MAX_TILE_M)
    if n <= tile_m:
        # Single block covering the whole array: block dims == array dims is
        # always legal, even when n is not a multiple of 8.
        tile_m = n
        chunk = n

    tiles_total = pl.cdiv(n, tile_m)
    tiles_per_core = pl.cdiv(tiles_total, _NUM_CORES)

    def in_index_map(c, i):
        # Clamp so the DMA never targets a block past the end of the array;
        # the kernel masks the duplicated rows by their (unclamped) logical
        # row index, so they contribute exactly zero.
        return (jnp.minimum(c * tiles_per_core + i, tiles_total - 1), 0)

    kernel = functools.partial(
        _pose_reg_kernel, tile_m=tile_m, chunk=chunk,
        tiles_per_core=tiles_per_core, n_valid=n)

    # 2 double-buffered input blocks (lanes pad 9 -> 128 in VMEM) + slack for
    # the (chunk, 9) accumulator / temporaries.  Fits v7x's 64 MiB VMEM.
    blk_vmem = _round_up(tile_m, 8) * 128 * 4
    vmem_limit = int(min(2 * blk_vmem + (8 << 20), 32 << 20))

    out = pl.pallas_call(
        kernel,
        out_shape=jax.ShapeDtypeStruct((_NUM_CORES * 8, 128), jnp.float32),
        grid=(_NUM_CORES, tiles_per_core),
        in_specs=[pl.BlockSpec((tile_m, 9), in_index_map)],
        out_specs=pl.BlockSpec((8, 128), lambda c, i: (c, 0)),
        scratch_shapes=[pltpu.VMEM((chunk, 9), jnp.float32)],
        compiler_params=pltpu.CompilerParams(
            dimension_semantics=("parallel", "arbitrary"),
            vmem_limit_bytes=vmem_limit,
        ),
    )(r2d)

    partials = out[0::8, 0]                  # one partial sum per core
    return jnp.sum(partials) * (1.0 / n)     # mean over all B*nH matrices


# ----------------------------------------------------------------------------
# Pure-JAX reference: literal translation of the PyTorch forward
# ----------------------------------------------------------------------------
def reference_loss(R, t=None):
    del t
    B, nH = R.shape[0], R.shape[1]
    n = B * nH
    Rf = R.reshape(n, 3, 3)
    trR = Rf[:, 0, 0] + Rf[:, 1, 1] + Rf[:, 2, 2]
    eye = jnp.eye(3, dtype=R.dtype)
    Q = Rf + jnp.transpose(Rf, (0, 2, 1)) + (1.0 - trR)[:, None, None] * eye[None]
    v = Q[:, 0, :][:, :, None]                                   # (n, 3, 1)
    j_hat = jnp.broadcast_to(
        jnp.array([0.0, 1.0, 0.0], R.dtype)[None, None, :], (n, 1, 3))
    angle = jnp.matmul(j_hat, v)                                 # (n, 1, 1)
    return jnp.mean(angle)


# ----------------------------------------------------------------------------
# Self-test
# ----------------------------------------------------------------------------
if __name__ == "__main__":
    key = jax.random.PRNGKey(0)
    kR, kt, kR2, kR3 = jax.random.split(key, 4)

    # 1) Small pose-shaped input: batch=2, nH=24 joints, 3x3 rotation each.
    B, nH = 2, 24
    R = jax.random.normal(kR, (B, nH, 3, 3), dtype=jnp.float32)
    t = jax.random.normal(kt, (B, nH, 3), dtype=jnp.float32)  # unused by forward

    loss = jax.block_until_ready(pose_regularization_loss(R, t))
    ref = reference_loss(R, t)
    assert np.allclose(np.asarray(loss), np.asarray(ref), rtol=1e-5, atol=1e-6), \
        (float(loss), float(ref))

    # 2) Multi-tile path: small tiles force several grid steps per core,
    #    a partial (masked) last block and the clamped duplicate block.
    B2, nH2 = 4, 72   # n = 288
    R2 = jax.random.normal(kR2, (B2, nH2, 3, 3), dtype=jnp.float32)
    loss2 = jax.block_until_ready(
        pose_regularization_loss(R2, None, tile_m=128, chunk=64))
    ref2 = reference_loss(R2)
    assert np.allclose(np.asarray(loss2), np.asarray(ref2), rtol=1e-5, atol=1e-6), \
        (float(loss2), float(ref2))

    # 3) Odd joint count (n not a multiple of 8) exercises the full-array
    #    single-block path with the row mask.
    B3, nH3 = 3, 17   # n = 51
    R3 = jax.random.normal(kR3, (B3, nH3, 3, 3), dtype=jnp.float32)
    loss3 = jax.block_until_ready(pose_regularization_loss(R3))
    ref3 = reference_loss(R3)
    assert np.allclose(np.asarray(loss3), np.asarray(ref3), rtol=1e-5, atol=1e-6), \
        (float(loss3), float(ref3))

    print("KERNEL_OK")
</pallas_src>

<mosaic_0001>
module attributes {stable_mosaic.version = 11 : i64} {
  func.func @_pose_reg_kernel(%arg0: i32, %arg1: i32, %arg2: memref<48x9xf32, #tpu.memory_space<vmem>>, %arg3: memref<8x128xf32, #tpu.memory_space<vmem>>, %arg4: memref<48x9xf32, #tpu.memory_space<vmem>>) attributes {dimension_semantics = [#tpu.dimension_semantics<parallel>, #tpu.dimension_semantics<arbitrary>], iteration_bounds = array<i64: 2, 1>, scalar_prefetch = 0 : i64, scratch_operands = 1 : i64, tpu.core_type = #tpu.core_type<tc>, window_params = [{transform_indices = @transform_0, window_bounds = array<i64: 48, 9>}, {transform_indices = @transform_1, window_bounds = array<i64: 8, 128>}]} {
    %c0_i32 = arith.constant 0 : i32
    %0 = arith.cmpi eq, %arg1, %c0_i32 : i32
    %1 = arith.extui %0 : i1 to i32
    %c0_i32_0 = arith.constant 0 : i32
    %2 = arith.cmpi ne, %1, %c0_i32_0 : i32
    scf.if %2 {
      %cst_11 = arith.constant 0.000000e+00 : f32
      %28 = vector.broadcast %cst_11 : f32 to vector<48x9xf32>
      %c0_12 = arith.constant 0 : index
      %c0_13 = arith.constant 0 : index
      %29 = vector.load %arg4[%c0_12, %c0_13] : memref<48x9xf32, #tpu.memory_space<vmem>>, vector<48x9xf32>
      tpu.vector_store %arg4[%c0_12, %c0_13], %28 {strides = array<i32>} : memref<48x9xf32, #tpu.memory_space<vmem>>, vector<48x9xf32>,
    } else {
    }
    %c1_i32 = arith.constant 1 : i32
    %3 = arith.muli %arg0, %c1_i32 : i32
    %4 = arith.addi %3, %arg1 : i32
    %c48_i32 = arith.constant 48 : i32
    %5 = arith.muli %4, %c48_i32 : i32
    %6 = tpu.iota {dimensions = array<i32: 1>} : vector<48x9xi32>
    %c1_i32_1 = arith.constant 1 : i32
    %7 = vector.broadcast %c1_i32_1 : i32 to vector<48x9xi32>
    %8 = arith.cmpi eq, %6, %7 : vector<48x9xi32>
    %c3_i32 = arith.constant 3 : i32
    %9 = vector.broadcast %c3_i32 : i32 to vector<48x9xi32>
    %10 = arith.cmpi eq, %6, %9 : vector<48x9xi32>
    %11 = arith.ori %8, %10 : vector<48x9xi1>
    %c0 = arith.constant 0 : index
    %c0_2 = arith.constant 0 : index
    %12 = vector.load %arg2[%c0, %c0_2] : memref<48x9xf32, #tpu.memory_space<vmem>>, vector<48x9xf32>
    %c0_i32_3 = arith.constant 0 : i32
    %13 = arith.addi %5, %c0_i32_3 : i32
    %14 = tpu.iota {dimensions = array<i32: 0>} : vector<48x9xi32>
    %15 = vector.broadcast %13 : i32 to vector<48x9xi32>
    %16 = arith.addi %15, %14 : vector<48x9xi32>
    %c48_i32_4 = arith.constant 48 : i32
    %17 = vector.broadcast %c48_i32_4 : i32 to vector<48x9xi32>
    %18 = arith.cmpi slt, %16, %17 : vector<48x9xi32>
    %19 = arith.andi %11, %18 : vector<48x9xi1>
    %c0_5 = arith.constant 0 : index
    %c0_6 = arith.constant 0 : index
    %20 = vector.load %arg4[%c0_5, %c0_6] : memref<48x9xf32, #tpu.memory_space<vmem>>, vector<48x9xf32>
    %cst = arith.constant 0.000000e+00 : f32
    %21 = vector.broadcast %cst : f32 to vector<48x9xf32>
    %22 = arith.select %19, %12, %21 : vector<48x9xi1>, vector<48x9xf32>
    %23 = arith.addf %20, %22 : vector<48x9xf32>
    %c0_7 = arith.constant 0 : index
    %c0_8 = arith.constant 0 : index
    %24 = vector.load %arg4[%c0_7, %c0_8] : memref<48x9xf32, #tpu.memory_space<vmem>>, vector<48x9xf32>
    tpu.vector_store %arg4[%c0_7, %c0_8], %23 {strides = array<i32>} : memref<48x9xf32, #tpu.memory_space<vmem>>, vector<48x9xf32>,
    %c0_i32_9 = arith.constant 0 : i32
    %25 = arith.cmpi eq, %arg1, %c0_i32_9 : i32
    %26 = arith.extui %25 : i1 to i32
    %c0_i32_10 = arith.constant 0 : i32
    %27 = arith.cmpi ne, %26, %c0_i32_10 : i32
    scf.if %27 {
      %c0_11 = arith.constant 0 : index
      %c0_12 = arith.constant 0 : index
      %28 = vector.load %arg4[%c0_11, %c0_12] : memref<48x9xf32, #tpu.memory_space<vmem>>, vector<48x9xf32>
      %29 = vector.shape_cast %28 : vector<48x9xf32> to vector<1x48x9xf32>
      %cst_13 = arith.constant dense<0.000000e+00> : vector<1xf32>
      %30 = vector.multi_reduction <add>, %29, %cst_13 [1, 2] : vector<1x48x9xf32> to vector<1xf32>
      %31 = vector.shape_cast %30 : vector<1xf32> to vector<1x1x1xf32>
      %32 = vector.extract %31[0, 0, 0] : f32 from vector<1x1x1xf32>
      %33 = vector.broadcast %32 : f32 to vector<1x1xf32>
      %34 = vector.shape_cast %33 : vector<1x1xf32> to vector<1x1xf32>
      %35 = vector.broadcast %34 : vector<1x1xf32> to vector<8x128xf32>
      %c0_14 = arith.constant 0 : index
      %c0_15 = arith.constant 0 : index
      %36 = vector.load %arg3[%c0_14, %c0_15] : memref<8x128xf32, #tpu.memory_space<vmem>>, vector<8x128xf32>
      tpu.vector_store %arg3[%c0_14, %c0_15], %35 {strides = array<i32>} : memref<8x128xf32, #tpu.memory_space<vmem>>, vector<8x128xf32>,
    } else {
    }
    return
  }
  func.func @transform_0(%arg0: i32, %arg1: i32) -> (i32, i32) {
    %c1_i32 = arith.constant 1 : i32
    %0 = arith.muli %arg0, %c1_i32 : i32
    %1 = arith.addi %0, %arg1 : i32
    %c0_i32 = arith.constant 0 : i32
    %2 = arith.minsi %1, %c0_i32 : i32
    %c0_i32_0 = arith.constant 0 : i32
    %c0_i32_1 = arith.constant 0 : i32
    return %2, %c0_i32_0 : i32, i32
  }
  func.func @transform_1(%arg0: i32, %arg1: i32) -> (i32, i32) {
    %c0_i32 = arith.constant 0 : i32
    %c0_i32_0 = arith.constant 0 : i32
    return %arg0, %c0_i32 : i32, i32
  }
}

</mosaic_0001>

<llo_original>
// kernel: tpu_custom_call.1
$region0: #{tpu_custom_call.1}
  #allocation0 [shape = 'u32[]', space=smem, size = 0x4, offset = 0x4, fixed_abs, tag = 'smem constant byte address 0x4 - core index']
  #allocation1 [shape = 'u32[72,128]{1,0:T(1,128)}', space=vmem, size = 0x9000, scoped, tag = 'internal scratch']
  #allocation2 [shape = 'f32[48,9]{1,0:T(8,128)}', space=vmem, size = 0x6000, scoped, tag = 'scratch operand']
  %s0 = inlined_call_operand.vmem [shape: f32[48,9], index: 0, kind: input, shape index: {}]
  %s1 = inlined_call_operand.hbm [shape: f32[16,128], index: 1, kind: output, shape index: {}]
  %s2 = sld [smem:[#allocation0]]
  $region45: #{tpu_custom_call.1} parent=0
    _
  %s4 = ssub.s32 1, %s2
  %s5 = scalar_select 0, %s4, %s2
  $region1: #{tpu_custom_call.1} parent=0
    #allocation3 [shape = 'u8[8192]{0}', space=vmem, size = 0x2000, scoped, tag = 'output window, operand 0']
    #allocation4 [shape = 's32[2]{0}', space=sflag, size = 0x8, scoped, tag = 'scoped memory for tpu_custom_call.1']
    %6 = vsyncpa [#allocation4], 0
    %s7 = scalar_lea.sflag [#allocation4], 1
    %8 = vsyncpa %s7, 0
    loop: start=0, step=1, limit=4
    $region2: #{tpu_custom_call.1} parent=1 // loop_pre_header
      _
    $region3: #{tpu_custom_call.1} parent=1 // loop_header
      %s10 = sphi 0, %s14
      %p11 = scmp.ge.s32.totalorder %s10, 4
      %s17 = sphi 0, %s29
      %s18 = sphi 0, %s25
      %s19 = sphi 0, %s17
      %s20 = sphi 0, %s18
      %s21 = sphi 0, %s19
      %s22 = sphi 0, %s20
      %s38 = sphi 0, %s40
      %s41 = sphi 0, %s38
      %s42 = sphi 0, %s41
      %s58 = sphi 0, %s42
      %s64 = sphi 0, %s66
      %s67 = sphi 0, %s64
      %s68 = sphi 0, %s67
      %s84 = sphi 0, %s68
    $region4: #{tpu_custom_call.1} parent=1 // loop_header_branch
      %13 = sbr.rel (%p11) target = $region8
    $region5: #{tpu_custom_call.1} parent=1 // loop_body
      %s15 = ssub.s32 %s10, 1
      %s16 = ssub.s32 %s10, 2
      %s23 = sadd.s32 1, %s18
      %p24 = scmp.ge.s32.totalorder %s23, 1
      %s25 = scalar_select %p24, 0, %s23
      %s26 = sadd.s32 1, %s17
      %s27 = scalar_select %p24, %s26, %s17
      %p28 = scmp.ge.s32.totalorder %s27, 2
      %s29 = scalar_select %p28, 0, %s27
      %s30 = sadd.s32 %s17, %s18
      %p31 = scmp.lt.s32.totalorder %s30, 0
      %s32 = scalar_select %p31, %s30, 0
      %s33 = sadd.s32 %s29, %s25
      %p34 = scmp.lt.s32.totalorder %s33, 0
      %s35 = scalar_select %p34, %s33, 0
      %s36 = ssub.s32 %s32, %s35
      %p37 = scmp.eq.s32.totalorder %s36, 0
      %s39 = sadd.s32 %s38, 1
      %s40 = scalar_select %p37, %s38, %s39
      %p43 = pneg %p37
      %p44 = scmp.eq.s32.totalorder %s10, 1
      %p45 = por %p43, %p44
      %p46 = scmp.ne.s32.totalorder %s38, %s41
      %p47 = scmp.eq.s32.totalorder %s10, 0
      %p48 = por %p46, %p47
      %p49 = scmp.ne.s32.totalorder %s38, %s41
      %p50 = scmp.eq.s32.totalorder %s15, 1
      %p51 = por %p49, %p50
      %p52 = scmp.ne.s32.totalorder %s41, %s42
      %p53 = scmp.eq.s32.totalorder %s15, 0
      %p54 = por %p52, %p53
      %p55 = scmp.ne.s32.totalorder %s41, %s42
      %p56 = scmp.eq.s32.totalorder %s16, 1
      %p57 = por %p55, %p56
      %p59 = scmp.ne.s32.totalorder %s42, %s58
      %p60 = scmp.eq.s32.totalorder %s16, 0
      %p61 = por %p59, %p60
      %s62 = ssub.s32 %s17, %s29
      %p63 = scmp.eq.s32.totalorder %s62, 0
      %s65 = sadd.s32 %s64, 1
      %s66 = scalar_select %p63, %s64, %s65
      %p69 = pneg %p63
      %p70 = scmp.eq.s32.totalorder %s10, 1
      %p71 = por %p69, %p70
      %p72 = scmp.ne.s32.totalorder %s64, %s67
      %p73 = scmp.eq.s32.totalorder %s10, 0
      %p74 = por %p72, %p73
      %p75 = scmp.ne.s32.totalorder %s64, %s67
      %p76 = scmp.eq.s32.totalorder %s15, 1
      %p77 = por %p75, %p76
      %p78 = scmp.ne.s32.totalorder %s67, %s68
      %p79 = scmp.eq.s32.totalorder %s15, 0
      %p80 = por %p78, %p79
      %p81 = scmp.ne.s32.totalorder %s67, %s68
      %p82 = scmp.eq.s32.totalorder %s16, 1
      %p83 = por %p81, %p82
      %p85 = scmp.ne.s32.totalorder %s68, %s84
      %p86 = scmp.eq.s32.totalorder %s16, 0
      %p87 = por %p85, %p86
      %p88 = scmp.le.s32.totalorder 1, %s10
      %p89 = scmp.lt.s32.totalorder %s10, 3
      %p90 = pnand %p88, %p89
      %p91 = pneg %p90
      // Predicated region
      $region9: #{tpu_custom_call.1} parent=5 // pred_check
        _
      $region10: #{tpu_custom_call.1} parent=5 // pred_check_branch
        %93 = sbr.rel (%p90) target = $region12
      $region11: #{tpu_custom_call.1} parent=5 // pred_region
        %s94 = ssub.s32 %s10, 1
      $region12: #{tpu_custom_call.1} parent=5 // pred_fallthru
        _
      %p95 = scmp.lt.s32.totalorder %s10, 2
      // Predicated region
      $region13: #{tpu_custom_call.1} parent=5 // pred_check
        %p96 = pneg %p95
      $region14: #{tpu_custom_call.1} parent=5 // pred_check_branch
        %98 = sbr.rel (%p96) target = $region16
      $region15: #{tpu_custom_call.1} parent=5 // pred_region
        // Predicated region
        $region17: #{tpu_custom_call.1} parent=15 // pred_check
          %p99 = pneg %p48
        $region18: #{tpu_custom_call.1} parent=15 // pred_check_branch
          %101 = sbr.rel (%p99) target = $region20
        $region19: #{tpu_custom_call.1} parent=15 // pred_region
          %s102 = sadd.s32 %s17, %s18
          %p103 = scmp.lt.s32.totalorder %s102, 0
          %s104 = scalar_select %p103, %s102, 0
          %s105 = smul.u32 6, %s104
          %p106 = scmp.lt.s32.totalorder %s105, 5
          %s107 = scalar_select %p106, %s105, 5
          %s108 = smul.addr %s107, 8
          %s109 = scalar_lea.vmem %s0, %s108
          %s110 = sadd.s32 %s17, %s18
          %p111 = scmp.lt.s32.totalorder %s110, 0
          %s112 = scalar_select %p111, %s110, 0
          %s113 = smul.u32 6, %s112
        $region20: #{tpu_custom_call.1} parent=15 // pred_fallthru
          _
      $region16: #{tpu_custom_call.1} parent=5 // pred_fallthru
        _
      %p114 = scmp.le.s32.totalorder 1, %s10
      %p115 = scmp.lt.s32.totalorder %s10, 3
      %p116 = pnand %p114, %p115
      %p117 = pneg %p116
      // Predicated region
      $region21: #{tpu_custom_call.1} parent=5 // pred_check
        _
      $region22: #{tpu_custom_call.1} parent=5 // pred_check_branch
        %119 = sbr.rel (%p116) target = $region24
      $region23: #{tpu_custom_call.1} parent=5 // pred_region
        %s120 = ssub.s32 %s10, 1
        %s121 = sadd.s32 %s19, %s20
        %p122 = scmp.lt.s32.totalorder %s121, 0
        %s123 = scalar_select %p122, %s121, 0
        %s124 = smul.u32 6, %s123
        %p125 = scmp.lt.s32.totalorder %s124, 5
        %s126 = scalar_select %p125, %s124, 5
        %s127 = smul.addr %s126, 8
        %s128 = scalar_lea.vmem %s0, %s127
        %p129 = pneg %p54
        %p130 = pneg %p51
        %p131 = pneg %p80
        %p132 = pneg %p77
        %s133 = sand.u32 %s67, 1
        %s134 = scalar_lea.sflag [#allocation4], %s133
        %s135 = sand.u32 %s67, 1
        %s136 = smul.addr %s135, 8
        %s137 = scalar_lea.vmem [#allocation3], %s136
        %s138 = sadd.s32 %s19, %s20
        %p139 = scmp.lt.s32.totalorder %s138, 0
        %s140 = scalar_select %p139, %s138, 0
        %s141 = smul.u32 6, %s140
        %p142 = scmp.lt.s32.totalorder %s141, 5
        %s143 = scalar_select %p142, %s141, 5
        %s144 = smul.addr %s143, 8
        %s145 = scalar_lea.vmem %s0, %s144
        %s146 = sadd.s32 %s19, %s20
        %p147 = scmp.lt.s32.totalorder %s146, 0
        %s148 = scalar_select %p147, %s146, 0
        %s149 = smul.u32 6, %s148
        %p150 = scmp.eq.s32.totalorder %s20, 0
        // Predicated region
        $region25: #{tpu_custom_call.1} parent=23 // pred_check
          %p151 = pneg %p150
        $region26: #{tpu_custom_call.1} parent=23 // pred_check_branch
          %153 = sbr.rel (%p151) target = $region28
        $region27: #{tpu_custom_call.1} parent=23 // pred_region
          %vm154 = vcmask 72704
          %155 = vst.msk [vmem:[#allocation2] sm:$0xff] %vm154, 0.0
          %156 = vst.msk [vmem:[#allocation2 + $0x8] sm:$0xff] %vm154, 0.0
          %157 = vst.msk [vmem:[#allocation2 + $0x10] sm:$0xff] %vm154, 0.0
          %158 = vst.msk [vmem:[#allocation2 + $0x18] sm:$0xff] %vm154, 0.0
          %159 = vst.msk [vmem:[#allocation2 + $0x20] sm:$0xff] %vm154, 0.0
          %160 = vst.msk [vmem:[#allocation2 + $0x28] sm:$0xff] %vm154, 0.0
        $region28: #{tpu_custom_call.1} parent=23 // pred_fallthru
          _
        %s161 = sadd.s32 %s19, %s20
        %s162 = smul.u32 %s161, 48
        %v163 = vlaneseq
        %v164 = vand.u32 %v163, 127
        %vm165 = vcmp.eq.s32.totalorder %v164, 1
        %vm166 = vcmp.eq.s32.totalorder %v164, 3
        %vm167 = vmor %vm165, %vm166
        %v168 = vld [vmem:[%s145] sm:$0xff]
        %v169 = vld [vmem:[%s145 + $0x8] sm:$0xff]
        %v170 = vld [vmem:[%s145 + $0x10] sm:$0xff]
        %v171 = vld [vmem:[%s145 + $0x18] sm:$0xff]
        %v172 = vld [vmem:[%s145 + $0x20] sm:$0xff]
        %v173 = vld [vmem:[%s145 + $0x28] sm:$0xff]
        %v174 = vlaneseq
        %v175 = vshrl.u32 %v174, 7
        %v176 = vadd.s32 %v175, 8
        %v177 = vadd.s32 %v175, 16
        %v178 = vadd.s32 %v175, 24
        %v179 = vadd.s32 %v175, 32
        %v180 = vadd.s32 %v175, 40
        %v181 = vstv %s162
        %v182 = vadd.s32 %v181, %v175
        %v183 = vadd.s32 %v181, %v176
        %v184 = vadd.s32 %v181, %v177
        %v185 = vadd.s32 %v181, %v178
        %v186 = vadd.s32 %v181, %v179
        %v187 = vadd.s32 %v181, %v180
        %vm188 = vcmp.lt.s32.totalorder %v182, 48
        %vm189 = vcmp.lt.s32.totalorder %v183, 48
        %vm190 = vcmp.lt.s32.totalorder %v184, 48
        %vm191 = vcmp.lt.s32.totalorder %v185, 48
        %vm192 = vcmp.lt.s32.totalorder %v186, 48
        %vm193 = vcmp.lt.s32.totalorder %v187, 48
        %vm194 = vmand %vm167, %vm188
        %vm195 = vmand %vm167, %vm189
        %vm196 = vmand %vm167, %vm190
        %vm197 = vmand %vm167, %vm191
        %vm198 = vmand %vm167, %vm192
        %vm199 = vmand %vm167, %vm193
        %v200 = vld [vmem:[#allocation2] sm:$0xff]
        %v201 = vld [vmem:[#allocation2 + $0x8] sm:$0xff]
        %v202 = vld [vmem:[#allocation2 + $0x10] sm:$0xff]
        %v203 = vld [vmem:[#allocation2 + $0x18] sm:$0xff]
        %v204 = vld [vmem:[#allocation2 + $0x20] sm:$0xff]
        %v205 = vld [vmem:[#allocation2 + $0x28] sm:$0xff]
        %v206 = vsel %vm194, %v168, 0.0
        %v207 = vsel %vm195, %v169, 0.0
        %v208 = vsel %vm196, %v170, 0.0
        %v209 = vsel %vm197, %v171, 0.0
        %v210 = vsel %vm198, %v172, 0.0
        %v211 = vsel %vm199, %v173, 0.0
        %v212 = vadd.f32 %v200, %v206
        %v213 = vadd.f32 %v201, %v207
        %v214 = vadd.f32 %v202, %v208
        %v215 = vadd.f32 %v203, %v209
        %v216 = vadd.f32 %v204, %v210
        %v217 = vadd.f32 %v205, %v211
        %vm218 = vcmask 72704
        %219 = vst.msk [vmem:[#allocation2] sm:$0xff] %vm218, %v212
        %220 = vst.msk [vmem:[#allocation2 + $0x8] sm:$0xff] %vm218, %v213
        %221 = vst.msk [vmem:[#allocation2 + $0x10] sm:$0xff] %vm218, %v214
        %222 = vst.msk [vmem:[#allocation2 + $0x18] sm:$0xff] %vm218, %v215
        %223 = vst.msk [vmem:[#allocation2 + $0x20] sm:$0xff] %vm218, %v216
        %224 = vst.msk [vmem:[#allocation2 + $0x28] sm:$0xff] %vm218, %v217
        // Predicated region
        $region29: #{tpu_custom_call.1} parent=23 // pred_check
          %p225 = pneg %p150
        $region30: #{tpu_custom_call.1} parent=23 // pred_check_branch
          %227 = sbr.rel (%p225) target = $region32
        $region31: #{tpu_custom_call.1} parent=23 // pred_region
          %v228 = vld [vmem:[#allocation2] sm:$0xff]
          %v229 = vld [vmem:[#allocation2 + $0x8] sm:$0xff]
          %v230 = vld [vmem:[#allocation2 + $0x10] sm:$0xff]
          %v231 = vld [vmem:[#allocation2 + $0x18] sm:$0xff]
          %v232 = vld [vmem:[#allocation2 + $0x20] sm:$0xff]
          %v233 = vld [vmem:[#allocation2 + $0x28] sm:$0xff]
          %v234 = vsel %vm218, %v228, 0.0
          %v235 = vsel %vm218, %v229, 0.0
          %v236 = vadd.f32 %v234, %v235
          %v237 = vsel %vm218, %v230, 0.0
          %v238 = vadd.f32 %v236, %v237
          %v239 = vsel %vm218, %v231, 0.0
          %v240 = vadd.f32 %v238, %v239
          %v241 = vsel %vm218, %v232, 0.0
          %v242 = vadd.f32 %v240, %v241
          %v243 = vsel %vm218, %v233, 0.0
          %v244 = vadd.f32 %v242, %v243
          %245 = vadd.xlane.f32.xlu0 %v244
          %v246 = vpop.xlane.xlu0 %245
          %v247 = vrot.slane %v246, 4
          %v248 = vadd.f32 %v246, %v247
          %v249 = vrot.slane %v248, 2
          %v250 = vadd.f32 %v248, %v249
          %v251 = vrot.slane %v250, 1
          %v252 = vadd.f32 %v250, %v251
          %s253 = vtos %v252
          %v254 = vstv %s253
          %255 = vst [vmem:[%s137] sm:$0xff] %v254
        $region32: #{tpu_custom_call.1} parent=23 // pred_fallthru
          _
        %s256 = sand.u32 %s67, 1
        %s257 = scalar_lea.sflag [#allocation4], %s256
        %s258 = sand.u32 %s67, 1
        %s259 = smul.addr %s258, 8
        %s260 = scalar_lea.vmem [#allocation3], %s259
        // Predicated region
        $region33: #{tpu_custom_call.1} parent=23 // pred_check
          %p261 = pneg %p77
        $region34: #{tpu_custom_call.1} parent=23 // pred_check_branch
          %263 = sbr.rel (%p261) target = $region36
        $region35: #{tpu_custom_call.1} parent=23 // pred_region
          %265 = vsyncadd %s257, 0
          %s266 = smul.addr %s19, 8
          %s267 = scalar_lea.hbm %s1, %s266
          %s269 = sshll.u32 %s260, 4
          %s270 = int_to_ptr.vmem [resolvable:$true] %s269
          %s271 = sshll.u32 %s267, 4
          %s272 = int_to_ptr.hbm [resolvable:$true] %s271
          %274 = dma.vmem_to_hbm [thread:$0]  %s270, 128, %s272, %s257
        $region36: #{tpu_custom_call.1} parent=23 // pred_fallthru
          _
      $region24: #{tpu_custom_call.1} parent=5 // pred_fallthru
        _
      %p275 = scmp.le.s32.totalorder 2, %s10
      // Predicated region
      $region37: #{tpu_custom_call.1} parent=5 // pred_check
        %p276 = pneg %p275
      $region38: #{tpu_custom_call.1} parent=5 // pred_check_branch
        %278 = sbr.rel (%p276) target = $region40
      $region39: #{tpu_custom_call.1} parent=5 // pred_region
        %s279 = ssub.s32 %s10, 2
        // Predicated region
        $region41: #{tpu_custom_call.1} parent=39 // pred_check
          %p280 = pneg %p83
        $region42: #{tpu_custom_call.1} parent=39 // pred_check_branch
          %282 = sbr.rel (%p280) target = $region44
        $region43: #{tpu_custom_call.1} parent=39 // pred_region
          %s283 = sand.u32 %s68, 1
          %s284 = scalar_lea.sflag [#allocation4], %s283
          %s285 = sand.u32 %s68, 1
          %s286 = smul.addr %s285, 8
          %s287 = scalar_lea.vmem [#allocation3], %s286
          %289 = dma.done %s284, 128
        $region44: #{tpu_custom_call.1} parent=39 // pred_fallthru
          _
      $region40: #{tpu_custom_call.1} parent=5 // pred_fallthru
        _
    $region6: #{tpu_custom_call.1} parent=1 // loop_footer
      %s14 = sadd.s32 1, %s10
    $region7: #{tpu_custom_call.1} parent=1 // loop_footer_branch
      %9 = sbr.rel target = $region3
    $region8: #{tpu_custom_call.1} parent=1 // loop_exit
      _
    %290 = vsyncpa [#allocation4], 1
    %s291 = scalar_lea.sflag [#allocation4], 1
    %292 = vsyncpa %s291, 1

</llo_original>
